<compile_context>
chip_gen: v7x
topology: tpu7x:2x2x1
jax: 0.10.0
libtpu: 0.0.40
codegen_flags: <defaults>
</compile_context>

<pallas_src>
import functools

import jax
import jax.numpy as jnp
from jax.experimental import pallas as pl
from jax.experimental.pallas import tpu as pltpu

F32 = jnp.float32
BF16 = jnp.bfloat16
VMEM_LIMIT = 48 * 1024 * 1024   # headroom on v7x (64 MiB physical), fine on v5e/v6e

RESULT_CHANNELS = [512, 512, 512, 512, 256, 128, 64, 1]
STRUCTURE_CHANNELS = [512, 1024, 512, 256, 128, 64, 64]
STYLE_CHANNELS = 512
NUM_BLOCKS = 7


def _cp(sem):
    return pltpu.CompilerParams(dimension_semantics=sem, vmem_limit_bytes=VMEM_LIMIT)


# --------------------------------------------------------------------------
# Kernels
# --------------------------------------------------------------------------
def matmul_bias_kernel(x_ref, w_ref, b_ref, o_ref):
    o_ref[...] = (jnp.dot(x_ref[...], w_ref[...], preferred_element_type=jnp.float32)
                  + b_ref[...]).astype(o_ref.dtype)


def bn_stats_kernel(x_ref, sum_ref, sq_ref):
    @pl.when(pl.program_id(0) == 0)
    def _init():
        sum_ref[...] = jnp.zeros_like(sum_ref)
        sq_ref[...] = jnp.zeros_like(sq_ref)

    x = x_ref[...].astype(jnp.float32)
    sum_ref[...] += jnp.sum(x, axis=0, keepdims=True)
    sq_ref[...] += jnp.sum(x * x, axis=0, keepdims=True)


def denorm_fuse_kernel(x_ref, s_ref, ws_ref, bs_ref, bnsc_ref, bnsh_ref,
                       style_ref, wm_ref, bm_ref, o_ref, *, C):
    """Fused DenormalizationLayer: BN apply, structure 1x1 conv (in-kernel dot
    against the concatenated mu|sigma weight), style modulation, input-mask
    sigmoid, blend, and the ReLU that always follows a denorm output."""
    xn = x_ref[0].astype(jnp.float32) * bnsc_ref[...] + bnsh_ref[...]       # (TM, C)
    ss = jnp.dot(s_ref[0], ws_ref[...],
                 preferred_element_type=jnp.float32) + bs_ref[...]           # (TM, 2C)
    smu, ssg = ss[:, :C], ss[:, C:]
    sp = style_ref[0]                                                        # (1, 2C)
    stmu, stsg = sp[:, :C], sp[:, C:]
    logits = jnp.sum(xn * wm_ref[...], axis=-1, keepdims=True) + bm_ref[...]
    mask = pl.reciprocal(1.0 + jnp.exp(-logits), approx=True)               # sigmoid (EUP)
    act = (1.0 - mask) * (smu + ssg * xn) + mask * (stmu + stsg * xn)
    o_ref[0] = jnp.maximum(act, 0.0).astype(o_ref.dtype)                    # fused ReLU


def conv3x3_kernel(x_ref, w_ref, b_ref, *rest, wp, th, valid_w, add_skip, apply_tanh):
    """3x3 'same' conv on a row tile of the flattened padded image.  Epilogue
    adds bias (+ residual skip) (+ tanh) and writes clean NHWC rows."""
    if add_skip:
        skip_ref, o_ref, acc_ref = rest
    else:
        skip_ref = None
        o_ref, acc_ref = rest
    step = th * wp
    base = pl.program_id(1) * step
    if step % 8 == 0:
        base = pl.multiple_of(base, 8)
    acc_ref[...] = jnp.zeros_like(acc_ref)
    for k in range(9):
        dy, dx = divmod(k, 3)
        lhs = x_ref[0, pl.ds(base + dy * wp + dx, step), :]
        acc_ref[...] += jnp.dot(lhs, w_ref[k], preferred_element_type=jnp.float32)
    bias = b_ref[...]
    for r in range(th):
        seg = acc_ref[pl.ds(r * wp, valid_w), :] + bias
        if add_skip:
            seg = seg + skip_ref[0, r].astype(jnp.float32)
        if apply_tanh:
            seg = jnp.tanh(seg)
        o_ref[0, r] = seg.astype(o_ref.dtype)


def upsample_kernel(idx_ref, x_ref, wa_ref, wb_ref, rw_ref, o_ref, *, tho):
    """align_corners x2 bilinear upsample: per output row, mix the two source
    rows (VPU) then interpolate columns with a small (Wo,W) matmul."""
    t = pl.program_id(1)
    for r in range(tho):
        ho = t * tho + r
        i0 = idx_ref[ho]
        a = wa_ref[pl.ds(ho, 1)]                                  # (1, 1)
        b = wb_ref[pl.ds(ho, 1)]
        ra = x_ref[0, pl.ds(i0, 1)][0].astype(jnp.float32)        # (W, C)
        rb = x_ref[0, pl.ds(i0 + 1, 1)][0].astype(jnp.float32)
        row = a * ra + b * rb
        out = jnp.dot(rw_ref[...], row.astype(jnp.bfloat16),
                      preferred_element_type=jnp.float32)          # (Wo, C)
        o_ref[0, r] = out.astype(o_ref.dtype)


# --------------------------------------------------------------------------
# Wrappers
# --------------------------------------------------------------------------
def matmul_bias(x, w, b, out_dtype=F32):
    """(M,K)@(K,N)+b with bf16 MXU operands.  Used for the boot ConvTranspose
    (as a matmul) and the fused style mu|sigma Linear layers."""
    M, K = x.shape
    Nc = w.shape[1]
    TN = Nc
    while TN > 512 and TN % 2 == 0:
        TN //= 2
    return pl.pallas_call(
        matmul_bias_kernel,
        out_shape=jax.ShapeDtypeStruct((M, Nc), out_dtype),
        grid_spec=pltpu.PrefetchScalarGridSpec(
            num_scalar_prefetch=0, grid=(Nc // TN,),
            in_specs=[pl.BlockSpec((M, K), lambda j: (0, 0)),
                      pl.BlockSpec((K, TN), lambda j: (0, j)),
                      pl.BlockSpec((1, TN), lambda j: (0, j))],
            out_specs=pl.BlockSpec((M, TN), lambda j: (0, j))),
        compiler_params=_cp(("parallel",)),
    )(x.astype(BF16), w.astype(BF16), b.reshape(1, Nc).astype(F32))


def bn_moments(x2d):
    """Per-channel mean / biased variance (training-mode BatchNorm stats)."""
    M, C = x2d.shape
    TM = min(M, 2048)
    s, sq = pl.pallas_call(
        bn_stats_kernel,
        out_shape=(jax.ShapeDtypeStruct((1, C), F32),
                   jax.ShapeDtypeStruct((1, C), F32)),
        grid_spec=pltpu.PrefetchScalarGridSpec(
            num_scalar_prefetch=0, grid=(M // TM,),
            in_specs=[pl.BlockSpec((TM, C), lambda i: (i, 0))],
            out_specs=(pl.BlockSpec((1, C), lambda i: (0, 0)),
                       pl.BlockSpec((1, C), lambda i: (0, 0)))),
        compiler_params=_cp(("arbitrary",)),
    )(x2d)
    mean = s / M
    var = jnp.maximum(sq / M - mean * mean, 0.0)   # clamp: E[x^2]-mean^2 can cancel
    return mean, var


def denorm_layer(x, s2, style, p, moments=None):
    """DenormalizationLayer forward (+ fused trailing ReLU)."""
    N, H, W, C = x.shape
    HW = H * W
    Cs = s2.shape[-1]
    if moments is None:
        moments = bn_moments(x.reshape(N * HW, C))
    mean, var = moments
    inv = (p["bn_gamma"].reshape(1, C) / jnp.sqrt(var + 1e-5)).astype(F32)
    shift = (p["bn_beta"].reshape(1, C) - mean * inv).astype(F32)
    style_pair = matmul_bias(style, p["style_w"], p["style_b"])             # (N, 2C) f32
    TM = min(HW, 1024)
    out = pl.pallas_call(
        functools.partial(denorm_fuse_kernel, C=C),
        out_shape=jax.ShapeDtypeStruct((N, HW, C), BF16),
        grid_spec=pltpu.PrefetchScalarGridSpec(
            num_scalar_prefetch=0, grid=(N, HW // TM),
            in_specs=[
                pl.BlockSpec((1, TM, C), lambda n, t: (n, t, 0)),       # x
                pl.BlockSpec((1, TM, Cs), lambda n, t: (n, t, 0)),      # structure
                pl.BlockSpec((Cs, 2 * C), lambda n, t: (0, 0)),         # [smu|ssg] weight
                pl.BlockSpec((1, 2 * C), lambda n, t: (0, 0)),          # [smu|ssg] bias
                pl.BlockSpec((1, C), lambda n, t: (0, 0)),              # bn scale
                pl.BlockSpec((1, C), lambda n, t: (0, 0)),              # bn shift
                pl.BlockSpec((1, 1, 2 * C), lambda n, t: (n, 0, 0)),    # [stmu|stsg]
                pl.BlockSpec((1, C), lambda n, t: (0, 0)),              # mask weight
                pl.BlockSpec((1, 1), lambda n, t: (0, 0)),              # mask bias
            ],
            out_specs=pl.BlockSpec((1, TM, C), lambda n, t: (n, t, 0))),
        compiler_params=_cp(("parallel", "parallel")),
    )(x.reshape(N, HW, C), s2, p["struct_w"], p["struct_b"].reshape(1, 2 * C),
      inv, shift, style_pair.reshape(N, 1, 2 * C),
      p["mask_w"].reshape(1, C), p["mask_b"].reshape(1, 1))
    return out.reshape(N, H, W, C)


def conv3x3(x, w, b, skip=None, apply_tanh=False, out_dtype=BF16):
    """x: (N,H,W,Cin), w: (9,Cin,Cout) -> (N,H,W,Cout), with optional fused
    residual skip and tanh.  Grid tiles output rows (>=2 steps everywhere)."""
    N, H, W, Cin = x.shape
    Cout = w.shape[2]
    Wp, Hp = W + 2, H + 3
    xflat = jnp.pad(x, ((0, 0), (1, 2), (1, 1), (0, 0))).reshape(N, Hp * Wp, Cin)
    if H >= 32:
        TH = 16
    elif H == 16:
        TH = 8
    else:
        TH = max(1, H // 2)
    in_specs = [pl.BlockSpec((1, Hp * Wp, Cin), lambda n, t: (n, 0, 0)),
                pl.BlockSpec((9, Cin, Cout), lambda n, t: (0, 0, 0)),
                pl.BlockSpec((1, Cout), lambda n, t: (0, 0))]
    args = [xflat, w, b.reshape(1, Cout).astype(F32)]
    if skip is not None:
        in_specs.append(pl.BlockSpec((1, TH, W, Cout), lambda n, t: (n, t, 0, 0)))
        args.append(skip)
    kernel = functools.partial(conv3x3_kernel, wp=Wp, th=TH, valid_w=W,
                               add_skip=skip is not None, apply_tanh=apply_tanh)
    return pl.pallas_call(
        kernel,
        out_shape=jax.ShapeDtypeStruct((N, H, W, Cout), out_dtype),
        grid_spec=pltpu.PrefetchScalarGridSpec(
            num_scalar_prefetch=0, grid=(N, H // TH),
            in_specs=in_specs,
            out_specs=pl.BlockSpec((1, TH, W, Cout), lambda n, t: (n, t, 0, 0)),
            scratch_shapes=[pltpu.VMEM((TH * Wp, Cout), jnp.float32)]),
        compiler_params=_cp(("parallel", "parallel")),
    )(*args)


def _interp_params(n_in, n_out):
    # align_corners=True bilinear weights (matches nn.UpsamplingBilinear2d).
    src = jnp.arange(n_out, dtype=F32) * (n_in - 1) / (n_out - 1)
    i0 = jnp.clip(jnp.floor(src).astype(jnp.int32), 0, n_in - 2)
    f = src - i0.astype(F32)
    return i0, 1.0 - f, f


def _interp_matrix(n_in, n_out):
    i0, wa, wb = _interp_params(n_in, n_out)
    m = jnp.zeros((n_out, n_in), F32)
    rows = jnp.arange(n_out)
    m = m.at[rows, i0].add(wa)
    m = m.at[rows, i0 + 1].add(wb)
    return m


def upsample_bilinear_x2(x):
    """UpsamplingBilinear2d(scale_factor=2) as a single fused NHWC kernel."""
    N, H, W, C = x.shape
    Ho, Wo = 2 * H, 2 * W
    idx, wa, wb = _interp_params(H, Ho)
    rw = _interp_matrix(W, Wo).astype(BF16)
    THo = 8 if Ho >= 16 else max(1, Ho // 2)
    return pl.pallas_call(
        functools.partial(upsample_kernel, tho=THo),
        out_shape=jax.ShapeDtypeStruct((N, Ho, Wo, C), BF16),
        grid_spec=pltpu.PrefetchScalarGridSpec(
            num_scalar_prefetch=1, grid=(N, Ho // THo),
            in_specs=[pl.BlockSpec((1, H, W, C), lambda n, t, idx: (n, 0, 0, 0)),
                      pl.BlockSpec((Ho, 1), lambda n, t, idx: (0, 0)),
                      pl.BlockSpec((Ho, 1), lambda n, t, idx: (0, 0)),
                      pl.BlockSpec((Wo, W), lambda n, t, idx: (0, 0))],
            out_specs=pl.BlockSpec((1, THo, Wo, C), lambda n, t, idx: (n, t, 0, 0))),
        compiler_params=_cp(("parallel", "parallel")),
    )(idx, x, wa.reshape(Ho, 1), wb.reshape(Ho, 1), rw)


def denorm_block(x, structure, style, p, final=False):
    N, H, W, C = x.shape
    s2 = structure.reshape(N, H * W, structure.shape[-1])
    mom = bn_moments(x.reshape(N * H * W, C))          # shared by denorm_1 / denorm_3
    d1 = denorm_layer(x, s2, style, p["d1"], moments=mom)
    c1 = conv3x3(d1, p["c1_w"], p["c1_b"])
    d2 = denorm_layer(c1, s2, style, p["d2"])
    if p["transform"]:
        d3 = denorm_layer(x, s2, style, p["d3"], moments=mom)
        skip = conv3x3(d3, p["c3_w"], p["c3_b"])
    else:
        skip = x
    return conv3x3(d2, p["c2_w"], p["c2_b"], skip=skip, apply_tanh=final,
                   out_dtype=F32 if final else BF16)


def generator_forward(structures, style, params):
    N = style.shape[0]
    structures = [s.astype(BF16) for s in structures]
    # boot: ConvTranspose2d(512, 512, 2, 1, 0) on a 1x1 input == matmul to (N, 2*2*512)
    result = matmul_bias(style, params["boot_w"], params["boot_b"],
                         out_dtype=BF16).reshape(N, 2, 2, 512)
    for i in range(NUM_BLOCKS):
        final = i == NUM_BLOCKS - 1
        result = denorm_block(result, structures[i], style, params["blocks"][i],
                              final=final)
        if not final:
            result = upsample_bilinear_x2(result)
    return result                                       # (N, 128, 128, 1) f32, tanh fused


# --------------------------------------------------------------------------
# Deterministic parameter init (synthetic; shapes follow the PyTorch __init__)
# --------------------------------------------------------------------------
def init_params(key):
    kbox = [key]

    def nxt():
        kbox[0], sub = jax.random.split(kbox[0])
        return sub

    def w_init(shape, fan_in, dtype=BF16):
        return (jax.random.normal(nxt(), shape, F32) / jnp.sqrt(float(fan_in))).astype(dtype)

    def b_init(shape):
        return (0.01 * jax.random.normal(nxt(), shape, F32)).astype(F32)

    def denorm_params(cin, cs):
        return dict(
            bn_gamma=jnp.ones((cin,), F32), bn_beta=jnp.zeros((cin,), F32),
            struct_w=w_init((cs, 2 * cin), cs),          # [structure_mu | structure_sigma]
            struct_b=b_init((2 * cin,)),
            style_w=w_init((STYLE_CHANNELS, 2 * cin), STYLE_CHANNELS),   # [style_mu | style_sigma]
            style_b=b_init((2 * cin,)),
            mask_w=w_init((cin,), cin, dtype=F32), mask_b=b_init((1,)),
        )

    params = dict(
        boot_w=w_init((STYLE_CHANNELS, 2 * 2 * 512), STYLE_CHANNELS),  # (Cin, flat(i,j,Cout))
        boot_b=b_init((2 * 2 * 512,)),
        blocks=[],
    )
    for i in range(NUM_BLOCKS):
        cin, cout, cs = RESULT_CHANNELS[i], RESULT_CHANNELS[i + 1], STRUCTURE_CHANNELS[i]
        bp = dict(
            transform=(cin != cout),
            d1=denorm_params(cin, cs),
            c1_w=w_init((9, cin, cin), 9 * cin), c1_b=b_init((cin,)),
            d2=denorm_params(cin, cs),
            c2_w=w_init((9, cin, cout), 9 * cin), c2_b=b_init((cout,)),
        )
        if cin != cout:
            bp["d3"] = denorm_params(cin, cs)
            bp["c3_w"] = w_init((9, cin, cout), 9 * cin)
            bp["c3_b"] = b_init((cout,))
        params["blocks"].append(bp)
    return params


if __name__ == "__main__":
    key = jax.random.PRNGKey(0)
    k_style, k_struct, k_params = jax.random.split(key, 3)
    N = 1
    spatial = [2, 4, 8, 16, 32, 64, 128]     # forced by boot (2x2) + x2 upsampling chain
    style = jax.random.normal(k_style, (N, STYLE_CHANNELS), F32)
    skeys = jax.random.split(k_struct, NUM_BLOCKS)
    structures = [0.5 * jax.random.normal(
        skeys[i], (N, spatial[i], spatial[i], STRUCTURE_CHANNELS[i]), F32)
        for i in range(NUM_BLOCKS)]
    params = init_params(k_params)

    out = generator_forward(structures, style, params)
    out = jax.block_until_ready(out)
    assert out.shape == (N, 128, 128, 1), out.shape
    assert bool(jnp.all(jnp.isfinite(out)))
    print("KERNEL_OK")
</pallas_src>

<mosaic_0001>
module attributes {stable_mosaic.version = 11 : i64} {
  func.func @matmul_bias_kernel(%arg0: i32, %arg1: memref<1x512xbf16, #tpu.memory_space<vmem>>, %arg2: memref<512x512xbf16, #tpu.memory_space<vmem>>, %arg3: memref<1x512xf32, #tpu.memory_space<vmem>>, %arg4: memref<1x512xbf16, #tpu.memory_space<vmem>>) attributes {dimension_semantics = [#tpu.dimension_semantics<parallel>], iteration_bounds = array<i64: 4>, scalar_prefetch = 0 : i64, scratch_operands = 0 : i64, tpu.core_type = #tpu.core_type<tc>, window_params = [{pipeline_mode = #tpu.pipeline_mode<synchronous>, transform_indices = @transform_0, window_bounds = array<i64: 1, 512>}, {transform_indices = @transform_1, window_bounds = array<i64: 512, 512>}, {transform_indices = @transform_2, window_bounds = array<i64: 1, 512>}, {transform_indices = @transform_3, window_bounds = array<i64: 1, 512>}]} {
    %c0 = arith.constant 0 : index
    %c0_0 = arith.constant 0 : index
    %0 = vector.load %arg1[%c0, %c0_0] : memref<1x512xbf16, #tpu.memory_space<vmem>>, vector<1x512xbf16>
    %c0_1 = arith.constant 0 : index
    %c0_2 = arith.constant 0 : index
    %1 = vector.load %arg2[%c0_1, %c0_2] : memref<512x512xbf16, #tpu.memory_space<vmem>>, vector<512x512xbf16>
    %cst = arith.constant dense<0.000000e+00> : vector<1x512xf32>
    %2 = tpu.matmul %0, %1, %cst {dimension_numbers = #tpu.dot_dimension_numbers<[1], [0], [0], [1], [0, 0, 1, 1], [], []>} : vector<1x512xbf16>, vector<512x512xbf16>, vector<1x512xf32> -> vector<1x512xf32>
    %c0_3 = arith.constant 0 : index
    %c0_4 = arith.constant 0 : index
    %3 = vector.load %arg3[%c0_3, %c0_4] : memref<1x512xf32, #tpu.memory_space<vmem>>, vector<1x512xf32>
    %4 = arith.addf %2, %3 : vector<1x512xf32>
    %5 = arith.truncf %4 : vector<1x512xf32> to vector<1x512xbf16>
    %c0_5 = arith.constant 0 : index
    %c0_6 = arith.constant 0 : index
    %6 = vector.load %arg4[%c0_5, %c0_6] : memref<1x512xbf16, #tpu.memory_space<vmem>>, vector<1x512xbf16>
    tpu.vector_store %arg4[%c0_5, %c0_6], %5 {strides = array<i32>} : memref<1x512xbf16, #tpu.memory_space<vmem>>, vector<1x512xbf16>,
    return
  }
  func.func @transform_0(%arg0: i32) -> (i32, i32) {
    %c0_i32 = arith.constant 0 : i32
    %c0_i32_0 = arith.constant 0 : i32
    %c0_i32_1 = arith.constant 0 : i32
    return %c0_i32, %c0_i32_0 : i32, i32
  }
  func.func @transform_1(%arg0: i32) -> (i32, i32) {
    %c0_i32 = arith.constant 0 : i32
    %c0_i32_0 = arith.constant 0 : i32
    return %c0_i32, %arg0 : i32, i32
  }
  func.func @transform_2(%arg0: i32) -> (i32, i32) {
    %c0_i32 = arith.constant 0 : i32
    %c0_i32_0 = arith.constant 0 : i32
    return %c0_i32, %arg0 : i32, i32
  }
  func.func @transform_3(%arg0: i32) -> (i32, i32) {
    %c0_i32 = arith.constant 0 : i32
    %c0_i32_0 = arith.constant 0 : i32
    return %c0_i32, %arg0 : i32, i32
  }
}

</mosaic_0001>

<llo_original>
// kernel: tpu_custom_call.1
$region0: #{tpu_custom_call.1}
  #allocation0 [shape = 'u32[]', space=smem, size = 0x4, offset = 0x4, fixed_abs, tag = 'smem constant byte address 0x4 - core index']
  #allocation1 [shape = 'u32[144,128]{1,0:T(1,128)}', space=vmem, size = 0x12000, scoped, tag = 'internal scratch']
  %s0 = inlined_call_operand.hbm [shape: bf16[1,512], index: 0, kind: input, shape index: {}]
  %s1 = inlined_call_operand.hbm [shape: bf16[512,2048], index: 1, kind: input, shape index: {}]
  %s2 = inlined_call_operand.hbm [shape: f32[1,2048], index: 2, kind: input, shape index: {}]
  %s3 = inlined_call_operand.hbm [shape: bf16[1,2048], index: 3, kind: output, shape index: {}]
  %s4 = sld [smem:[#allocation0]]
  $region57: #{tpu_custom_call.1} parent=0
    _
  %s6 = ssub.s32 1, %s4
  %s7 = scalar_select 0, %s6, %s4
  $region1: #{tpu_custom_call.1} parent=0
    #allocation2 [shape = 'u8[2048]{0}', space=vmem, size = 0x800, scoped, tag = 'input window, operand 0, single buffered']
    #allocation3 [shape = 's32[2]{0}', space=sflag, size = 0x8, scoped, tag = 'scoped memory for tpu_custom_call.1']
    #allocation4 [shape = 's32[2]{0}', space=sflag, size = 0x8, scoped, tag = 'scoped memory for tpu_custom_call.1']
    #allocation5 [shape = 'u8[1048576]{0}', space=vmem, size = 0x100000, scoped, tag = 'input window, operand 1']
    #allocation6 [shape = 's32[2]{0}', space=sflag, size = 0x8, scoped, tag = 'scoped memory for tpu_custom_call.1']
    #allocation7 [shape = 'u8[4096]{0}', space=vmem, size = 0x1000, scoped, tag = 'input window, operand 2']
    #allocation8 [shape = 'u8[4096]{0}', space=vmem, size = 0x1000, scoped, tag = 'output window, operand 0']
    %8 = vsyncpa [#allocation3], 0
    %9 = vsyncpa [#allocation6], 0
    %s10 = scalar_lea.sflag [#allocation6], 1
    %11 = vsyncpa %s10, 0
    %12 = vsyncpa [#allocation4], 0
    %s13 = scalar_lea.sflag [#allocation4], 1
    %14 = vsyncpa %s13, 0
    loop: start=0, step=1, limit=6
    $region2: #{tpu_custom_call.1} parent=1 // loop_pre_header
      _
    $region3: #{tpu_custom_call.1} parent=1 // loop_header
      %s16 = sphi 0, %s20
      %p17 = scmp.ge.s32.totalorder %s16, 6
      %s24 = sphi 0, %s24
      %s26 = sphi 0, %s24
      %s27 = sphi 0, %s26
      %s41 = sphi 0, %s27
      %s47 = sphi 0, %s49
      %s50 = sphi 0, %s47
      %s51 = sphi 0, %s50
      %s67 = sphi 0, %s51
      %s73 = sphi 0, %s75
      %s76 = sphi 0, %s73
      %s77 = sphi 0, %s76
      %s93 = sphi 0, %s77
      %s99 = sphi 0, %s101
      %s102 = sphi 0, %s99
      %s103 = sphi 0, %s102
      %s119 = sphi 0, %s103
    $region4: #{tpu_custom_call.1} parent=1 // loop_header_branch
      %19 = sbr.rel (%p17) target = $region8
    $region5: #{tpu_custom_call.1} parent=1 // loop_body
      %s21 = ssub.s32 %s16, 1
      %s22 = ssub.s32 %s16, 2
      %s23 = sadd.s32 %s16, 1
      %s25 = sadd.s32 %s24, 1
      %p28 = scmp.eq.s32.totalorder %s16, 3
      %p29 = scmp.ne.s32.totalorder %s24, %s26
      %p30 = scmp.eq.s32.totalorder %s16, 0
      %p31 = por %p29, %p30
      %p32 = scmp.ne.s32.totalorder %s24, %s26
      %p33 = scmp.eq.s32.totalorder %s21, 3
      %p34 = por %p32, %p33
      %p35 = scmp.ne.s32.totalorder %s26, %s27
      %p36 = scmp.eq.s32.totalorder %s21, 0
      %p37 = por %p35, %p36
      %p38 = scmp.ne.s32.totalorder %s26, %s27
      %p39 = scmp.eq.s32.totalorder %s22, 3
      %p40 = por %p38, %p39
      %p42 = scmp.ne.s32.totalorder %s27, %s41
      %p43 = scmp.eq.s32.totalorder %s22, 0
      %p44 = por %p42, %p43
      %s45 = ssub.s32 %s16, %s23
      %p46 = scmp.eq.s32.totalorder %s45, 0
      %s48 = sadd.s32 %s47, 1
      %s49 = scalar_select %p46, %s47, %s48
      %p52 = pneg %p46
      %p53 = scmp.eq.s32.totalorder %s16, 3
      %p54 = por %p52, %p53
      %p55 = scmp.ne.s32.totalorder %s47, %s50
      %p56 = scmp.eq.s32.totalorder %s16, 0
      %p57 = por %p55, %p56
      %p58 = scmp.ne.s32.totalorder %s47, %s50
      %p59 = scmp.eq.s32.totalorder %s21, 3
      %p60 = por %p58, %p59
      %p61 = scmp.ne.s32.totalorder %s50, %s51
      %p62 = scmp.eq.s32.totalorder %s21, 0
      %p63 = por %p61, %p62
      %p64 = scmp.ne.s32.totalorder %s50, %s51
      %p65 = scmp.eq.s32.totalorder %s22, 3
      %p66 = por %p64, %p65
      %p68 = scmp.ne.s32.totalorder %s51, %s67
      %p69 = scmp.eq.s32.totalorder %s22, 0
      %p70 = por %p68, %p69
      %s71 = ssub.s32 %s16, %s23
      %p72 = scmp.eq.s32.totalorder %s71, 0
      %s74 = sadd.s32 %s73, 1
      %s75 = scalar_select %p72, %s73, %s74
      %p78 = pneg %p72
      %p79 = scmp.eq.s32.totalorder %s16, 3
      %p80 = por %p78, %p79
      %p81 = scmp.ne.s32.totalorder %s73, %s76
      %p82 = scmp.eq.s32.totalorder %s16, 0
      %p83 = por %p81, %p82
      %p84 = scmp.ne.s32.totalorder %s73, %s76
      %p85 = scmp.eq.s32.totalorder %s21, 3
      %p86 = por %p84, %p85
      %p87 = scmp.ne.s32.totalorder %s76, %s77
      %p88 = scmp.eq.s32.totalorder %s21, 0
      %p89 = por %p87, %p88
      %p90 = scmp.ne.s32.totalorder %s76, %s77
      %p91 = scmp.eq.s32.totalorder %s22, 3
      %p92 = por %p90, %p91
      %p94 = scmp.ne.s32.totalorder %s77, %s93
      %p95 = scmp.eq.s32.totalorder %s22, 0
      %p96 = por %p94, %p95
      %s97 = ssub.s32 %s16, %s23
      %p98 = scmp.eq.s32.totalorder %s97, 0
      %s100 = sadd.s32 %s99, 1
      %s101 = scalar_select %p98, %s99, %s100
      %p104 = pneg %p98
      %p105 = scmp.eq.s32.totalorder %s16, 3
      %p106 = por %p104, %p105
      %p107 = scmp.ne.s32.totalorder %s99, %s102
      %p108 = scmp.eq.s32.totalorder %s16, 0
      %p109 = por %p107, %p108
      %p110 = scmp.ne.s32.totalorder %s99, %s102
      %p111 = scmp.eq.s32.totalorder %s21, 3
      %p112 = por %p110, %p111
      %p113 = scmp.ne.s32.totalorder %s102, %s103
      %p114 = scmp.eq.s32.totalorder %s21, 0
      %p115 = por %p113, %p114
      %p116 = scmp.ne.s32.totalorder %s102, %s103
      %p117 = scmp.eq.s32.totalorder %s22, 3
      %p118 = por %p116, %p117
      %p120 = scmp.ne.s32.totalorder %s103, %s119
      %p121 = scmp.eq.s32.totalorder %s22, 0
      %p122 = por %p120, %p121
      %p123 = scmp.le.s32.totalorder 1, %s16
      %p124 = scmp.lt.s32.totalorder %s16, 5
      %p125 = pnand %p123, %p124
      %p126 = pneg %p125
      // Predicated region
      $region9: #{tpu_custom_call.1} parent=5 // pred_check
        _
      $region10: #{tpu_custom_call.1} parent=5 // pred_check_branch
        %128 = sbr.rel (%p125) target = $region12
      $region11: #{tpu_custom_call.1} parent=5 // pred_region
        %s129 = ssub.s32 %s16, 1
        // Predicated region
        $region13: #{tpu_custom_call.1} parent=11 // pred_check
          %p130 = pneg %p37
        $region14: #{tpu_custom_call.1} parent=11 // pred_check_branch
          %132 = sbr.rel (%p130) target = $region16
        $region15: #{tpu_custom_call.1} parent=11 // pred_region
          %s134 = ssub.s32 64, 64
          %135 = vsyncadd [#allocation3], %s134
          %s137 = sshll.u32 [#allocation2], 4
          %s138 = int_to_ptr.vmem [resolvable:$true] %s137
          %140 = dma.hbm_to_vmem [thread:$0]  %s0, 64, %s138, [#allocation3]
        $region16: #{tpu_custom_call.1} parent=11 // pred_fallthru
          _
      $region12: #{tpu_custom_call.1} parent=5 // pred_fallthru
        _
      %p141 = scmp.lt.s32.totalorder %s16, 4
      // Predicated region
      $region17: #{tpu_custom_call.1} parent=5 // pred_check
        %p142 = pneg %p141
      $region18: #{tpu_custom_call.1} parent=5 // pred_check_branch
        %144 = sbr.rel (%p142) target = $region20
      $region19: #{tpu_custom_call.1} parent=5 // pred_region
        // Predicated region
        $region21: #{tpu_custom_call.1} parent=19 // pred_check
          %p145 = pneg %p57
        $region22: #{tpu_custom_call.1} parent=19 // pred_check_branch
          %147 = sbr.rel (%p145) target = $region24
        $region23: #{tpu_custom_call.1} parent=19 // pred_region
          %s148 = sand.u32 %s16, 1
          %s149 = scalar_lea.sflag [#allocation6], %s148
          %s150 = sand.u32 %s47, 1
          %s151 = smul.addr %s150, 1024
          %s152 = scalar_lea.vmem [#allocation5], %s151
          %s153 = smul.u32 4, %s16
          %s155 = ssub.s32 16384, 16384
          %156 = vsyncadd %s149, %s155
          %s157 = smul.addr %s153, 64
          %s158 = scalar_lea.hbm %s1, %s157
          %s159 = sshll.u32 %s152, 4
          %s160 = int_to_ptr.vmem [resolvable:$true] %s159
          %165 = dma.hbm_to_vmem [thread:$0]  %s158, 16384, %s160, %s149, 1024, 256, 16
        $region24: #{tpu_custom_call.1} parent=19 // pred_fallthru
          _
        // Predicated region
        $region25: #{tpu_custom_call.1} parent=19 // pred_check
          %p166 = pneg %p83
        $region26: #{tpu_custom_call.1} parent=19 // pred_check_branch
          %168 = sbr.rel (%p166) target = $region28
        $region27: #{tpu_custom_call.1} parent=19 // pred_region
          %s169 = sand.u32 %s16, 1
          %s170 = scalar_lea.sflag [#allocation6], %s169
          %s171 = sand.u32 %s73, 1
          %s172 = smul.addr %s171, 4
          %s173 = scalar_lea.vmem [#allocation7], %s172
          %s174 = smul.u32 4, %s16
          %s176 = ssub.s32 64, 64
          %177 = vsyncadd %s170, %s176
          %s178 = smul.addr %s174, 16
          %s179 = scalar_lea.hbm %s2, %s178
          %s181 = sshll.u32 %s173, 4
          %s182 = int_to_ptr.vmem [resolvable:$true] %s181
          %184 = dma.hbm_to_vmem [thread:$0]  %s179, 64, %s182, %s170
        $region28: #{tpu_custom_call.1} parent=19 // pred_fallthru
          _
      $region20: #{tpu_custom_call.1} parent=5 // pred_fallthru
        _
      %p185 = scmp.le.s32.totalorder 1, %s16
      %p186 = scmp.lt.s32.totalorder %s16, 5
      %p187 = pnand %p185, %p186
      %p188 = pneg %p187
      // Predicated region
      $region29: #{tpu_custom_call.1} parent=5 // pred_check
        _
      $region30: #{tpu_custom_call.1} parent=5 // pred_check_branch
        %190 = sbr.rel (%p187) target = $region32
      $region31: #{tpu_custom_call.1} parent=5 // pred_region
        %s191 = ssub.s32 %s16, 1
        // Predicated region
        $region33: #{tpu_custom_call.1} parent=31 // pred_check
          %p192 = pneg %p37
        $region34: #{tpu_custom_call.1} parent=31 // pred_check_branch
          %194 = sbr.rel (%p192) target = $region36
        $region35: #{tpu_custom_call.1} parent=31 // pred_region
          %195 = dma.done [#allocation3], 64
        $region36: #{tpu_custom_call.1} parent=31 // pred_fallthru
          _
        %s196 = sand.u32 %s21, 1
        %s197 = scalar_lea.sflag [#allocation6], %s196
        %s198 = sand.u32 %s50, 1
        %s199 = smul.addr %s198, 1024
        %s200 = scalar_lea.vmem [#allocation5], %s199
        // Predicated region
        $region37: #{tpu_custom_call.1} parent=31 // pred_check
          %p201 = pneg %p63
        $region38: #{tpu_custom_call.1} parent=31 // pred_check_branch
          %203 = sbr.rel (%p201) target = $region40
        $region39: #{tpu_custom_call.1} parent=31 // pred_region
          %204 = dma.done %s197, 16384
        $region40: #{tpu_custom_call.1} parent=31 // pred_fallthru
          _
        %s205 = sand.u32 %s21, 1
        %s206 = scalar_lea.sflag [#allocation6], %s205
        %s207 = sand.u32 %s76, 1
        %s208 = smul.addr %s207, 4
        %s209 = scalar_lea.vmem [#allocation7], %s208
        // Predicated region
        $region41: #{tpu_custom_call.1} parent=31 // pred_check
          %p210 = pneg %p89
        $region42: #{tpu_custom_call.1} parent=31 // pred_check_branch
          %212 = sbr.rel (%p210) target = $region44
        $region43: #{tpu_custom_call.1} parent=31 // pred_region
          %213 = dma.done %s206, 64
        $region44: #{tpu_custom_call.1} parent=31 // pred_fallthru
          _
        %p214 = pneg %p37
        %p215 = pneg %p34
        %s216 = sand.u32 %s21, 1
        %s217 = scalar_lea.sflag [#allocation6], %s216
        %s218 = sand.u32 %s50, 1
        %s219 = smul.addr %s218, 1024
        %s220 = scalar_lea.vmem [#allocation5], %s219
        %p221 = pneg %p63
        %p222 = pneg %p60
        %s223 = sand.u32 %s21, 1
        %s224 = scalar_lea.sflag [#allocation6], %s223
        %s225 = sand.u32 %s76, 1
        %s226 = smul.addr %s225, 4
        %s227 = scalar_lea.vmem [#allocation7], %s226
        %p228 = pneg %p89
        %p229 = pneg %p86
        %p230 = pneg %p115
        %p231 = pneg %p112
        %s232 = sand.u32 %s102, 1
        %s233 = scalar_lea.sflag [#allocation4], %s232
        %s234 = sand.u32 %s102, 1
        %s235 = smul.addr %s234, 4
        %s236 = scalar_lea.vmem [#allocation8], %s235
        %s237 = smul.u32 4, %s21
        %s238 = smul.u32 4, %s21
        %s239 = smul.u32 4, %s21
        %v240 = vld [vmem:[#allocation2] sm:$0xf]
        %v241 = vld [vmem:[%s200] sm:$0xff]
        %v242 = vld [vmem:[%s200 + $0x8] sm:$0xff]
        %v243 = vld [vmem:[%s200 + $0x10] sm:$0xff]
        %v244 = vld [vmem:[%s200 + $0x18] sm:$0xff]
        %v245 = vld [vmem:[%s200 + $0x20] sm:$0xff]
        %v246 = vld [vmem:[%s200 + $0x28] sm:$0xff]
        %v247 = vld [vmem:[%s200 + $0x30] sm:$0xff]
        %v248 = vld [vmem:[%s200 + $0x38] sm:$0xff]
        %v249 = vld [vmem:[%s200 + $0x40] sm:$0xff]
        %v250 = vld [vmem:[%s200 + $0x48] sm:$0xff]
        %v251 = vld [vmem:[%s200 + $0x50] sm:$0xff]
        %v252 = vld [vmem:[%s200 + $0x58] sm:$0xff]
        %v253 = vld [vmem:[%s200 + $0x60] sm:$0xff]
        %v254 = vld [vmem:[%s200 + $0x68] sm:$0xff]
        %v255 = vld [vmem:[%s200 + $0x70] sm:$0xff]
        %v256 = vld [vmem:[%s200 + $0x78] sm:$0xff]
        %v257 = vld [vmem:[%s200 + $0x80] sm:$0xff]
        %v258 = vld [vmem:[%s200 + $0x88] sm:$0xff]
        %v259 = vld [vmem:[%s200 + $0x90] sm:$0xff]
        %v260 = vld [vmem:[%s200 + $0x98] sm:$0xff]
        %v261 = vld [vmem:[%s200 + $0xa0] sm:$0xff]
        %v262 = vld [vmem:[%s200 + $0xa8] sm:$0xff]
        %v263 = vld [vmem:[%s200 + $0xb0] sm:$0xff]
        %v264 = vld [vmem:[%s200 + $0xb8] sm:$0xff]
        %v265 = vld [vmem:[%s200 + $0xc0] sm:$0xff]
        %v266 = vld [vmem:[%s200 + $0xc8] sm:$0xff]
        %v267 = vld [vmem:[%s200 + $0xd0] sm:$0xff]
        %v268 = vld [vmem:[%s200 + $0xd8] sm:$0xff]
        %v269 = vld [vmem:[%s200 + $0xe0] sm:$0xff]
        %v270 = vld [vmem:[%s200 + $0xe8] sm:$0xff]
        %v271 = vld [vmem:[%s200 + $0xf0] sm:$0xff]
        %v272 = vld [vmem:[%s200 + $0xf8] sm:$0xff]
        %v273 = vld [vmem:[%s200 + $0x100] sm:$0xff]
        %v274 = vld [vmem:[%s200 + $0x108] sm:$0xff]
        %v275 = vld [vmem:[%s200 + $0x110] sm:$0xff]
        %v276 = vld [vmem:[%s200 + $0x118] sm:$0xff]
        %v277 = vld [vmem:[%s200 + $0x120] sm:$0xff]
        %v278 = vld [vmem:[%s200 + $0x128] sm:$0xff]
        %v279 = vld [vmem:[%s200 + $0x130] sm:$0xff]
        %v280 = vld [vmem:[%s200 + $0x138] sm:$0xff]
        %v281 = vld [vmem:[%s200 + $0x140] sm:$0xff]
        %v282 = vld [vmem:[%s200 + $0x148] sm:$0xff]
        %v283 = vld [vmem:[%s200 + $0x150] sm:$0xff]
        %v284 = vld [vmem:[%s200 + $0x158] sm:$0xff]
        %v285 = vld [vmem:[%s200 + $0x160] sm:$0xff]
        %v286 = vld [vmem:[%s200 + $0x168] sm:$0xff]
        %v287 = vld [vmem:[%s200 + $0x170] sm:$0xff]
        %v288 = vld [vmem:[%s200 + $0x178] sm:$0xff]
        %v289 = vld [vmem:[%s200 + $0x180] sm:$0xff]
        %v290 = vld [vmem:[%s200 + $0x188] sm:$0xff]
        %v291 = vld [vmem:[%s200 + $0x190] sm:$0xff]
        %v292 = vld [vmem:[%s200 + $0x198] sm:$0xff]
        %v293 = vld [vmem:[%s200 + $0x1a0] sm:$0xff]
        %v294 = vld [vmem:[%s200 + $0x1a8] sm:$0xff]
        %v295 = vld [vmem:[%s200 + $0x1b0] sm:$0xff]
        %v296 = vld [vmem:[%s200 + $0x1b8] sm:$0xff]
        %v297 = vld [vmem:[%s200 + $0x1c0] sm:$0xff]
        %v298 = vld [vmem:[%s200 + $0x1c8] sm:$0xff]
        %v299 = vld [vmem:[%s200 + $0x1d0] sm:$0xff]
        %v300 = vld [vmem:[%s200 + $0x1d8] sm:$0xff]
        %v301 = vld [vmem:[%s200 + $0x1e0] sm:$0xff]
        %v302 = vld [vmem:[%s200 + $0x1e8] sm:$0xff]
        %v303 = vld [vmem:[%s200 + $0x1f0] sm:$0xff]
        %v304 = vld [vmem:[%s200 + $0x1f8] sm:$0xff]
        %v305 = vld [vmem:[%s200 + $0x200] sm:$0xff]
        %v306 = vld [vmem:[%s200 + $0x208] sm:$0xff]
        %v307 = vld [vmem:[%s200 + $0x210] sm:$0xff]
        %v308 = vld [vmem:[%s200 + $0x218] sm:$0xff]
        %v309 = vld [vmem:[%s200 + $0x220] sm:$0xff]
        %v310 = vld [vmem:[%s200 + $0x228] sm:$0xff]
        %v311 = vld [vmem:[%s200 + $0x230] sm:$0xff]
        %v312 = vld [vmem:[%s200 + $0x238] sm:$0xff]
        %v313 = vld [vmem:[%s200 + $0x240] sm:$0xff]
        %v314 = vld [vmem:[%s200 + $0x248] sm:$0xff]
        %v315 = vld [vmem:[%s200 + $0x250] sm:$0xff]
        %v316 = vld [vmem:[%s200 + $0x258] sm:$0xff]
        %v317 = vld [vmem:[%s200 + $0x260] sm:$0xff]
        %v318 = vld [vmem:[%s200 + $0x268] sm:$0xff]
        %v319 = vld [vmem:[%s200 + $0x270] sm:$0xff]
        %v320 = vld [vmem:[%s200 + $0x278] sm:$0xff]
        %v321 = vld [vmem:[%s200 + $0x280] sm:$0xff]
        %v322 = vld [vmem:[%s200 + $0x288] sm:$0xff]
        %v323 = vld [vmem:[%s200 + $0x290] sm:$0xff]
        %v324 = vld [vmem:[%s200 + $0x298] sm:$0xff]
        %v325 = vld [vmem:[%s200 + $0x2a0] sm:$0xff]
        %v326 = vld [vmem:[%s200 + $0x2a8] sm:$0xff]
        %v327 = vld [vmem:[%s200 + $0x2b0] sm:$0xff]
        %v328 = vld [vmem:[%s200 + $0x2b8] sm:$0xff]
        %v329 = vld [vmem:[%s200 + $0x2c0] sm:$0xff]
        %v330 = vld [vmem:[%s200 + $0x2c8] sm:$0xff]
        %v331 = vld [vmem:[%s200 + $0x2d0] sm:$0xff]
        %v332 = vld [vmem:[%s200 + $0x2d8] sm:$0xff]
        %v333 = vld [vmem:[%s200 + $0x2e0] sm:$0xff]
        %v334 = vld [vmem:[%s200 + $0x2e8] sm:$0xff]
        %v335 = vld [vmem:[%s200 + $0x2f0] sm:$0xff]
        %v336 = vld [vmem:[%s200 + $0x2f8] sm:$0xff]
        %v337 = vld [vmem:[%s200 + $0x300] sm:$0xff]
        %v338 = vld [vmem:[%s200 + $0x308] sm:$0xff]
        %v339 = vld [vmem:[%s200 + $0x310] sm:$0xff]
        %v340 = vld [vmem:[%s200 + $0x318] sm:$0xff]
        %v341 = vld [vmem:[%s200 + $0x320] sm:$0xff]
        %v342 = vld [vmem:[%s200 + $0x328] sm:$0xff]
        %v343 = vld [vmem:[%s200 + $0x330] sm:$0xff]
        %v344 = vld [vmem:[%s200 + $0x338] sm:$0xff]
        %v345 = vld [vmem:[%s200 + $0x340] sm:$0xff]
        %v346 = vld [vmem:[%s200 + $0x348] sm:$0xff]
        %v347 = vld [vmem:[%s200 + $0x350] sm:$0xff]
        %v348 = vld [vmem:[%s200 + $0x358] sm:$0xff]
        %v349 = vld [vmem:[%s200 + $0x360] sm:$0xff]
        %v350 = vld [vmem:[%s200 + $0x368] sm:$0xff]
        %v351 = vld [vmem:[%s200 + $0x370] sm:$0xff]
        %v352 = vld [vmem:[%s200 + $0x378] sm:$0xff]
        %v353 = vld [vmem:[%s200 + $0x380] sm:$0xff]
        %v354 = vld [vmem:[%s200 + $0x388] sm:$0xff]
        %v355 = vld [vmem:[%s200 + $0x390] sm:$0xff]
        %v356 = vld [vmem:[%s200 + $0x398] sm:$0xff]
        %v357 = vld [vmem:[%s200 + $0x3a0] sm:$0xff]
        %v358 = vld [vmem:[%s200 + $0x3a8] sm:$0xff]
        %v359 = vld [vmem:[%s200 + $0x3b0] sm:$0xff]
        %v360 = vld [vmem:[%s200 + $0x3b8] sm:$0xff]
        %v361 = vld [vmem:[%s200 + $0x3c0] sm:$0xff]
        %v362 = vld [vmem:[%s200 + $0x3c8] sm:$0xff]
        %v363 = vld [vmem:[%s200 + $0x3d0] sm:$0xff]
        %v364 = vld [vmem:[%s200 + $0x3d8] sm:$0xff]
        %v365 = vld [vmem:[%s200 + $0x3e0] sm:$0xff]
        %v366 = vld [vmem:[%s200 + $0x3e8] sm:$0xff]
        %v367 = vld [vmem:[%s200 + $0x3f0] sm:$0xff]
        %v368 = vld [vmem:[%s200 + $0x3f8] sm:$0xff]
        %v369 = vld [vmem:[%s209] sm:$0xf]
        %v372 = vunpack.c.l.s4 1966171168
        %v373 = vunpack.c.0.s8 %v372
        %v374 = vlaneseq
        %v375 = vshrl.u32 %v374, 7
        %v376 = vsub.s32 %v373, %v375
        %v377 = vrot.slane %v240, %v376
        %v378 = vcombine.high %v377, %v377
        %v380 = vunpack.c.l.s4 1966171168
        %v381 = vunpack.c.0.s8 %v380
        %v382 = vlaneseq
        %v383 = vshrl.u32 %v382, 7
        %v384 = vsub.s32 %v381, %v383
        %v385 = vrot.slane %v377, %v384
        %v387 = vunpack.c.l.s4 1966171168
        %v388 = vunpack.c.0.s8 %v387
        %v389 = vlaneseq
        %v390 = vshrl.u32 %v389, 7
        %v391 = vsub.s32 %v388, %v390
        %v392 = vrot.slane %v378, %v391
        %v393 = vcombine.high %v385, %v385
        %v394 = vcombine.high %v392, %v392
        %v527 = vunpack.c.l.b16 %v241
        %v528 = vunpack.c.h.b16 %v241
        %v529 = vunpack.c.l.b16 %v242
        %v530 = vunpack.c.h.b16 %v242
        %v531 = vunpack.c.l.b16 %v243
        %v532 = vunpack.c.h.b16 %v243
        %v533 = vunpack.c.l.b16 %v244
        %v534 = vunpack.c.h.b16 %v244
        %v535 = vunpack.c.l.b16 %v245
        %v536 = vunpack.c.h.b16 %v245
        %v537 = vunpack.c.l.b16 %v246
        %v538 = vunpack.c.h.b16 %v246
        %v539 = vunpack.c.l.b16 %v247
        %v540 = vunpack.c.h.b16 %v247
        %v541 = vunpack.c.l.b16 %v248
        %v542 = vunpack.c.h.b16 %v248
        %v543 = vunpack.c.l.b16 %v249
        %v544 = vunpack.c.h.b16 %v249
        %v545 = vunpack.c.l.b16 %v250
        %v546 = vunpack.c.h.b16 %v250
        %v547 = vunpack.c.l.b16 %v251
        %v548 = vunpack.c.h.b16 %v251
        %v549 = vunpack.c.l.b16 %v252
        %v550 = vunpack.c.h.b16 %v252
        %v551 = vunpack.c.l.b16 %v253
        %v552 = vunpack.c.h.b16 %v253
        %v553 = vunpack.c.l.b16 %v254
        %v554 = vunpack.c.h.b16 %v254
        %v555 = vunpack.c.l.b16 %v255
        %v556 = vunpack.c.h.b16 %v255
        %v557 = vunpack.c.l.b16 %v256
        %v558 = vunpack.c.h.b16 %v256
        %v559 = vunpack.c.l.b16 %v257
        %v560 = vunpack.c.h.b16 %v257
        %v561 = vunpack.c.l.b16 %v258
        %v562 = vunpack.c.h.b16 %v258
        %v563 = vunpack.c.l.b16 %v259
        %v564 = vunpack.c.h.b16 %v259
        %v565 = vunpack.c.l.b16 %v260
        %v566 = vunpack.c.h.b16 %v260
        %v567 = vunpack.c.l.b16 %v261
        %v568 = vunpack.c.h.b16 %v261
        %v569 = vunpack.c.l.b16 %v262
        %v570 = vunpack.c.h.b16 %v262
        %v571 = vunpack.c.l.b16 %v263
        %v572 = vunpack.c.h.b16 %v263
        %v573 = vunpack.c.l.b16 %v264
        %v574 = vunpack.c.h.b16 %v264
        %v575 = vunpack.c.l.b16 %v265
        %v576 = vunpack.c.h.b16 %v265
        %v577 = vunpack.c.l.b16 %v266
        %v578 = vunpack.c.h.b16 %v266
        %v579 = vunpack.c.l.b16 %v267
        %v580 = vunpack.c.h.b16 %v267
        %v581 = vunpack.c.l.b16 %v268
        %v582 = vunpack.c.h.b16 %v268
        %v583 = vunpack.c.l.b16 %v269
        %v584 = vunpack.c.h.b16 %v269
        %v585 = vunpack.c.l.b16 %v270
        %v586 = vunpack.c.h.b16 %v270
        %v587 = vunpack.c.l.b16 %v271
        %v588 = vunpack.c.h.b16 %v271
        %v589 = vunpack.c.l.b16 %v272
        %v590 = vunpack.c.h.b16 %v272
        %v591 = vunpack.c.l.b16 %v273
        %v592 = vunpack.c.h.b16 %v273
        %v593 = vunpack.c.l.b16 %v274
        %v594 = vunpack.c.h.b16 %v274
        %v595 = vunpack.c.l.b16 %v275
        %v596 = vunpack.c.h.b16 %v275
        %v597 = vunpack.c.l.b16 %v276
        %v598 = vunpack.c.h.b16 %v276
        %v599 = vunpack.c.l.b16 %v277
        %v600 = vunpack.c.h.b16 %v277
        %v601 = vunpack.c.l.b16 %v278
        %v602 = vunpack.c.h.b16 %v278
        %v603 = vunpack.c.l.b16 %v279
        %v604 = vunpack.c.h.b16 %v279
        %v605 = vunpack.c.l.b16 %v280
        %v606 = vunpack.c.h.b16 %v280
        %v607 = vunpack.c.l.b16 %v281
        %v608 = vunpack.c.h.b16 %v281
        %v609 = vunpack.c.l.b16 %v282
        %v610 = vunpack.c.h.b16 %v282
        %v611 = vunpack.c.l.b16 %v283
        %v612 = vunpack.c.h.b16 %v283
        %v613 = vunpack.c.l.b16 %v284
        %v614 = vunpack.c.h.b16 %v284
        %v615 = vunpack.c.l.b16 %v285
        %v616 = vunpack.c.h.b16 %v285
        %v617 = vunpack.c.l.b16 %v286
        %v618 = vunpack.c.h.b16 %v286
        %v619 = vunpack.c.l.b16 %v287
        %v620 = vunpack.c.h.b16 %v287
        %v621 = vunpack.c.l.b16 %v288
        %v622 = vunpack.c.h.b16 %v288
        %v623 = vunpack.c.l.b16 %v289
        %v624 = vunpack.c.h.b16 %v289
        %v625 = vunpack.c.l.b16 %v290
        %v626 = vunpack.c.h.b16 %v290
        %v627 = vunpack.c.l.b16 %v291
        %v628 = vunpack.c.h.b16 %v291
        %v629 = vunpack.c.l.b16 %v292
        %v630 = vunpack.c.h.b16 %v292
        %v631 = vunpack.c.l.b16 %v293
        %v632 = vunpack.c.h.b16 %v293
        %v633 = vunpack.c.l.b16 %v294
        %v634 = vunpack.c.h.b16 %v294
        %v635 = vunpack.c.l.b16 %v295
        %v636 = vunpack.c.h.b16 %v295
        %v637 = vunpack.c.l.b16 %v296
        %v638 = vunpack.c.h.b16 %v296
        %v639 = vunpack.c.l.b16 %v297
        %v640 = vunpack.c.h.b16 %v297
        %v641 = vunpack.c.l.b16 %v298
        %v642 = vunpack.c.h.b16 %v298
        %v643 = vunpack.c.l.b16 %v299
        %v644 = vunpack.c.h.b16 %v299
        %v645 = vunpack.c.l.b16 %v300
        %v646 = vunpack.c.h.b16 %v300
        %v647 = vunpack.c.l.b16 %v301
        %v648 = vunpack.c.h.b16 %v301
        %v649 = vunpack.c.l.b16 %v302
        %v650 = vunpack.c.h.b16 %v302
        %v651 = vunpack.c.l.b16 %v303
        %v652 = vunpack.c.h.b16 %v303
        %v653 = vunpack.c.l.b16 %v304
        %v654 = vunpack.c.h.b16 %v304
        %v655 = vunpack.c.l.b16 %v305
        %v656 = vunpack.c.h.b16 %v305
        %v657 = vunpack.c.l.b16 %v306
        %v658 = vunpack.c.h.b16 %v306
        %v659 = vunpack.c.l.b16 %v307
        %v660 = vunpack.c.h.b16 %v307
        %v661 = vunpack.c.l.b16 %v308
        %v662 = vunpack.c.h.b16 %v308
        %v663 = vunpack.c.l.b16 %v309
        %v664 = vunpack.c.h.b16 %v309
        %v665 = vunpack.c.l.b16 %v310
        %v666 = vunpack.c.h.b16 %v310
        %v667 = vunpack.c.l.b16 %v311
        %v668 = vunpack.c.h.b16 %v311
        %v669 = vunpack.c.l.b16 %v312
        %v670 = vunpack.c.h.b16 %v312
        %v671 = vunpack.c.l.b16 %v313
        %v672 = vunpack.c.h.b16 %v313
        %v673 = vunpack.c.l.b16 %v314
        %v674 = vunpack.c.h.b16 %v314
        %v675 = vunpack.c.l.b16 %v315
        %v676 = vunpack.c.h.b16 %v315
        %v677 = vunpack.c.l.b16 %v316
        %v678 = vunpack.c.h.b16 %v316
        %v679 = vunpack.c.l.b16 %v317
        %v680 = vunpack.c.h.b16 %v317
        %v681 = vunpack.c.l.b16 %v318
        %v682 = vunpack.c.h.b16 %v318
        %v683 = vunpack.c.l.b16 %v319
        %v684 = vunpack.c.h.b16 %v319
        %v685 = vunpack.c.l.b16 %v320
        %v686 = vunpack.c.h.b16 %v320
        %v687 = vunpack.c.l.b16 %v321
        %v688 = vunpack.c.h.b16 %v321
        %v689 = vunpack.c.l.b16 %v322
        %v690 = vunpack.c.h.b16 %v322
        %v691 = vunpack.c.l.b16 %v323
        %v692 = vunpack.c.h.b16 %v323
        %v693 = vunpack.c.l.b16 %v324
        %v694 = vunpack.c.h.b16 %v324
        %v695 = vunpack.c.l.b16 %v325
        %v696 = vunpack.c.h.b16 %v325
        %v697 = vunpack.c.l.b16 %v326
        %v698 = vunpack.c.h.b16 %v326
        %v699 = vunpack.c.l.b16 %v327
        %v700 = vunpack.c.h.b16 %v327
        %v701 = vunpack.c.l.b16 %v328
        %v702 = vunpack.c.h.b16 %v328
        %v703 = vunpack.c.l.b16 %v329
        %v704 = vunpack.c.h.b16 %v329
        %v705 = vunpack.c.l.b16 %v330
        %v706 = vunpack.c.h.b16 %v330
        %v707 = vunpack.c.l.b16 %v331
        %v708 = vunpack.c.h.b16 %v331
        %v709 = vunpack.c.l.b16 %v332
        %v710 = vunpack.c.h.b16 %v332
        %v711 = vunpack.c.l.b16 %v333
        %v712 = vunpack.c.h.b16 %v333
        %v713 = vunpack.c.l.b16 %v334
        %v714 = vunpack.c.h.b16 %v334
        %v715 = vunpack.c.l.b16 %v335
        %v716 = vunpack.c.h.b16 %v335
        %v717 = vunpack.c.l.b16 %v336
        %v718 = vunpack.c.h.b16 %v336
        %v719 = vunpack.c.l.b16 %v337
        %v720 = vunpack.c.h.b16 %v337
        %v721 = vunpack.c.l.b16 %v338
        %v722 = vunpack.c.h.b16 %v338
        %v723 = vunpack.c.l.b16 %v339
        %v724 = vunpack.c.h.b16 %v339
        %v725 = vunpack.c.l.b16 %v340
        %v726 = vunpack.c.h.b16 %v340
        %v727 = vunpack.c.l.b16 %v341
        %v728 = vunpack.c.h.b16 %v341
        %v729 = vunpack.c.l.b16 %v342
        %v730 = vunpack.c.h.b16 %v342
        %v731 = vunpack.c.l.b16 %v343
        %v732 = vunpack.c.h.b16 %v343
        %v733 = vunpack.c.l.b16 %v344
        %v734 = vunpack.c.h.b16 %v344
        %v735 = vunpack.c.l.b16 %v345
        %v736 = vunpack.c.h.b16 %v345
        %v737 = vunpack.c.l.b16 %v346
        %v738 = vunpack.c.h.b16 %v346
        %v739 = vunpack.c.l.b16 %v347
        %v740 = vunpack.c.h.b16 %v347
        %v741 = vunpack.c.l.b16 %v348
        %v742 = vunpack.c.h.b16 %v348
        %v743 = vunpack.c.l.b16 %v349
        %v744 = vunpack.c.h.b16 %v349
        %v745 = vunpack.c.l.b16 %v350
        %v746 = vunpack.c.h.b16 %v350
        %v747 = vunpack.c.l.b16 %v351
        %v748 = vunpack.c.h.b16 %v351
        %v749 = vunpack.c.l.b16 %v352
        %v750 = vunpack.c.h.b16 %v352
        %v751 = vunpack.c.l.b16 %v353
        %v752 = vunpack.c.h.b16 %v353
        %v753 = vunpack.c.l.b16 %v354
        %v754 = vunpack.c.h.b16 %v354
        %v755 = vunpack.c.l.b16 %v355
        %v756 = vunpack.c.h.b16 %v355
        %v757 = vunpack.c.l.b16 %v356
        %v758 = vunpack.c.h.b16 %v356
        %v759 = vunpack.c.l.b16 %v357
        %v760 = vunpack.c.h.b16 %v357
        %v761 = vunpack.c.l.b16 %v358
        %v762 = vunpack.c.h.b16 %v358
        %v763 = vunpack.c.l.b16 %v359
        %v764 = vunpack.c.h.b16 %v359
        %v765 = vunpack.c.l.b16 %v360
        %v766 = vunpack.c.h.b16 %v360
        %v767 = vunpack.c.l.b16 %v361
        %v768 = vunpack.c.h.b16 %v361
        %v769 = vunpack.c.l.b16 %v362
        %v770 = vunpack.c.h.b16 %v362
        %v771 = vunpack.c.l.b16 %v363
        %v772 = vunpack.c.h.b16 %v363
        %v773 = vunpack.c.l.b16 %v364
        %v774 = vunpack.c.h.b16 %v364
        %v775 = vunpack.c.l.b16 %v365
        %v776 = vunpack.c.h.b16 %v365
        %v777 = vunpack.c.l.b16 %v366
        %v778 = vunpack.c.h.b16 %v366
        %v779 = vunpack.c.l.b16 %v367
        %v780 = vunpack.c.h.b16 %v367
        %v781 = vunpack.c.l.b16 %v368
        %v782 = vunpack.c.h.b16 %v368
        %v783 = vpack.c.b16 %v531, %v527
        %v784 = vpack.c.b16 %v532, %v528
        %v785 = vpack.c.b16 %v533, %v529
        %v786 = vpack.c.b16 %v534, %v530
        %v787 = vpack.c.b16 %v539, %v535
        %v788 = vpack.c.b16 %v540, %v536
        %v789 = vpack.c.b16 %v541, %v537
        %v790 = vpack.c.b16 %v542, %v538
        %v791 = vpack.c.b16 %v547, %v543
        %v792 = vpack.c.b16 %v548, %v544
        %v793 = vpack.c.b16 %v549, %v545
        %v794 = vpack.c.b16 %v550, %v546
        %v795 = vpack.c.b16 %v555, %v551
        %v796 = vpack.c.b16 %v556, %v552
        %v797 = vpack.c.b16 %v557, %v553
        %v798 = vpack.c.b16 %v558, %v554
        %v799 = vpack.c.b16 %v563, %v559
        %v800 = vpack.c.b16 %v564, %v560
        %v801 = vpack.c.b16 %v565, %v561
        %v802 = vpack.c.b16 %v566, %v562
        %v803 = vpack.c.b16 %v571, %v567
        %v804 = vpack.c.b16 %v572, %v568
        %v805 = vpack.c.b16 %v573, %v569
        %v806 = vpack.c.b16 %v574, %v570
        %v807 = vpack.c.b16 %v579, %v575
        %v808 = vpack.c.b16 %v580, %v576
        %v809 = vpack.c.b16 %v581, %v577
        %v810 = vpack.c.b16 %v582, %v578
        %v811 = vpack.c.b16 %v587, %v583
        %v812 = vpack.c.b16 %v588, %v584
        %v813 = vpack.c.b16 %v589, %v585
        %v814 = vpack.c.b16 %v590, %v586
        %v815 = vpack.c.b16 %v595, %v591
        %v816 = vpack.c.b16 %v596, %v592
        %v817 = vpack.c.b16 %v597, %v593
        %v818 = vpack.c.b16 %v598, %v594
        %v819 = vpack.c.b16 %v603, %v599
        %v820 = vpack.c.b16 %v604, %v600
        %v821 = vpack.c.b16 %v605, %v601
        %v822 = vpack.c.b16 %v606, %v602
        %v823 = vpack.c.b16 %v611, %v607
        %v824 = vpack.c.b16 %v612, %v608
        %v825 = vpack.c.b16 %v613, %v609
        %v826 = vpack.c.b16 %v614, %v610
        %v827 = vpack.c.b16 %v619, %v615
        %v828 = vpack.c.b16 %v620, %v616
        %v829 = vpack.c.b16 %v621, %v617
        %v830 = vpack.c.b16 %v622, %v618
        %v831 = vpack.c.b16 %v627, %v623
        %v832 = vpack.c.b16 %v628, %v624
        %v833 = vpack.c.b16 %v629, %v625
        %v834 = vpack.c.b16 %v630, %v626
        %v835 = vpack.c.b16 %v635, %v631
        %v836 = vpack.c.b16 %v636, %v632
        %v837 = vpack.c.b16 %v637, %v633
        %v838 = vpack.c.b16 %v638, %v634
        %v839 = vpack.c.b16 %v643, %v639
        %v840 = vpack.c.b16 %v644, %v640
        %v841 = vpack.c.b16 %v645, %v641
        %v842 = vpack.c.b16 %v646, %v642
        %v843 = vpack.c.b16 %v651, %v647
        %v844 = vpack.c.b16 %v652, %v648
        %v845 = vpack.c.b16 %v653, %v649
        %v846 = vpack.c.b16 %v654, %v650
        %v847 = vpack.c.b16 %v659, %v655
        %v848 = vpack.c.b16 %v660, %v656
        %v849 = vpack.c.b16 %v661, %v657
        %v850 = vpack.c.b16 %v662, %v658
        %v851 = vpack.c.b16 %v667, %v663
        %v852 = vpack.c.b16 %v668, %v664
        %v853 = vpack.c.b16 %v669, %v665
        %v854 = vpack.c.b16 %v670, %v666
        %v855 = vpack.c.b16 %v675, %v671
        %v856 = vpack.c.b16 %v676, %v672
        %v857 = vpack.c.b16 %v677, %v673
        %v858 = vpack.c.b16 %v678, %v674
        %v859 = vpack.c.b16 %v683, %v679
        %v860 = vpack.c.b16 %v684, %v680
        %v861 = vpack.c.b16 %v685, %v681
        %v862 = vpack.c.b16 %v686, %v682
        %v863 = vpack.c.b16 %v691, %v687
        %v864 = vpack.c.b16 %v692, %v688
        %v865 = vpack.c.b16 %v693, %v689
        %v866 = vpack.c.b16 %v694, %v690
        %v867 = vpack.c.b16 %v699, %v695
        %v868 = vpack.c.b16 %v700, %v696
        %v869 = vpack.c.b16 %v701, %v697
        %v870 = vpack.c.b16 %v702, %v698
        %v871 = vpack.c.b16 %v707, %v703
        %v872 = vpack.c.b16 %v708, %v704
        %v873 = vpack.c.b16 %v709, %v705
        %v874 = vpack.c.b16 %v710, %v706
        %v875 = vpack.c.b16 %v715, %v711
        %v876 = vpack.c.b16 %v716, %v712
        %v877 = vpack.c.b16 %v717, %v713
        %v878 = vpack.c.b16 %v718, %v714
        %v879 = vpack.c.b16 %v723, %v719
        %v880 = vpack.c.b16 %v724, %v720
        %v881 = vpack.c.b16 %v725, %v721
        %v882 = vpack.c.b16 %v726, %v722
        %v883 = vpack.c.b16 %v731, %v727
        %v884 = vpack.c.b16 %v732, %v728
        %v885 = vpack.c.b16 %v733, %v729
        %v886 = vpack.c.b16 %v734, %v730
        %v887 = vpack.c.b16 %v739, %v735
        %v888 = vpack.c.b16 %v740, %v736
        %v889 = vpack.c.b16 %v741, %v737
        %v890 = vpack.c.b16 %v742, %v738
        %v891 = vpack.c.b16 %v747, %v743
        %v892 = vpack.c.b16 %v748, %v744
        %v893 = vpack.c.b16 %v749, %v745
        %v894 = vpack.c.b16 %v750, %v746
        %v895 = vpack.c.b16 %v755, %v751
        %v896 = vpack.c.b16 %v756, %v752
        %v897 = vpack.c.b16 %v757, %v753
        %v898 = vpack.c.b16 %v758, %v754
        %v899 = vpack.c.b16 %v763, %v759
        %v900 = vpack.c.b16 %v764, %v760
        %v901 = vpack.c.b16 %v765, %v761
        %v902 = vpack.c.b16 %v766, %v762
        %v903 = vpack.c.b16 %v771, %v767
        %v904 = vpack.c.b16 %v772, %v768
        %v905 = vpack.c.b16 %v773, %v769
        %v906 = vpack.c.b16 %v774, %v770
        %v907 = vpack.c.b16 %v779, %v775
        %v908 = vpack.c.b16 %v780, %v776
        %v909 = vpack.c.b16 %v781, %v777
        %v910 = vpack.c.b16 %v782, %v778
        %v1040 = vlaneseq
        %v1041 = vshrl.u32 %v1040, 7
        %v1042 = vsub.s32 0, %v1041
        %v1043 = vrot.slane %v369, %v1042
        %v1044 = vlaneseq
        %v1045 = vshrl.u32 %v1044, 7
        %v1046 = vsub.s32 1, %v1045
        %v1047 = vrot.slane %v369, %v1046
        %v1048 = vlaneseq
        %v1049 = vshrl.u32 %v1048, 7
        %v1050 = vsub.s32 2, %v1049
        %v1051 = vrot.slane %v369, %v1050
        %v1052 = vlaneseq
        %v1053 = vshrl.u32 %v1052, 7
        %v1054 = vsub.s32 3, %v1053
        %v1055 = vrot.slane %v369, %v1054
        %1060 = vmatprep.subr.bf16.mxu0 %v784
        %1061 = vmatpush1.bf16.msra.mxu0 %v783
        %1062 = vmatprep.subr.bf16.mxu0 %v788
        %1063 = vmatpush1.bf16.msra.mxu0 %v787
        %1064 = vmatprep.subr.bf16.mxu0 %v792
        %1065 = vmatpush1.bf16.msra.mxu0 %v791
        %1066 = vmatprep.subr.bf16.mxu0 %v796
        %1067 = vmatpush1.bf16.msra.mxu0 %v795
        %1068 = vmatprep.subr.bf16.mxu0 %v800
        %1069 = vmatpush1.bf16.msra.mxu0 %v799
        %1070 = vmatprep.subr.bf16.mxu0 %v804
        %1071 = vmatpush1.bf16.msra.mxu0 %v803
        %1072 = vmatprep.subr.bf16.mxu0 %v808
        %1073 = vmatpush1.bf16.msra.mxu0 %v807
        %1074 = vmatprep.subr.bf16.mxu0 %v812
        %1075 = vmatpush1.bf16.msra.mxu0 %v811
        %1076 = vmatprep.subr.bf16.mxu0 %v816
        %1077 = vmatpush1.bf16.msra.mxu0 %v815
        %1078 = vmatprep.subr.bf16.mxu0 %v820
        %1079 = vmatpush1.bf16.msra.mxu0 %v819
        %1080 = vmatprep.subr.bf16.mxu0 %v824
        %1081 = vmatpush1.bf16.msra.mxu0 %v823
        %1082 = vmatprep.subr.bf16.mxu0 %v828
        %1083 = vmatpush1.bf16.msra.mxu0 %v827
        %1084 = vmatprep.subr.bf16.mxu0 %v832
        %1085 = vmatpush1.bf16.msra.mxu0 %v831
        %1086 = vmatprep.subr.bf16.mxu0 %v836
        %1087 = vmatpush1.bf16.msra.mxu0 %v835
        %1088 = vmatprep.subr.bf16.mxu0 %v840
        %1089 = vmatpush1.bf16.msra.mxu0 %v839
        %1090 = vmatprep.subr.bf16.mxu0 %v844
        %1091 = vmatpush1.bf16.msra.mxu0 %v843
        %1092 = vmatprep.mubr.bf16.mxu0 %v392
        %1093 = vmatmul.mubr.bf16.gmra.mrb[0].mxu0 %v385
        %v1094 = vpop.f32.mrb[0].mxu0
        %v1095 = vadd.f32 %v1043, %v1094
        %v1096 = vpop.f32.mrb[0].mxu0
        %v1097 = vadd.f32 %v1047, %v1096
        %v1098 = vpop.f32.mrb[0].mxu0
        %v1099 = vpop.f32.mrb[0].mxu0
        %1100 = vdwg.mxu0
        %1101 = vmatprep.subr.bf16.mxu0 %v848
        %1102 = vmatpush1.bf16.msra.mxu0 %v847
        %1103 = vmatprep.subr.bf16.mxu0 %v852
        %1104 = vmatpush1.bf16.msra.mxu0 %v851
        %1105 = vmatprep.subr.bf16.mxu0 %v856
        %1106 = vmatpush1.bf16.msra.mxu0 %v855
        %1107 = vmatprep.subr.bf16.mxu0 %v860
        %1108 = vmatpush1.bf16.msra.mxu0 %v859
        %1109 = vmatprep.subr.bf16.mxu0 %v864
        %1110 = vmatpush1.bf16.msra.mxu0 %v863
        %1111 = vmatprep.subr.bf16.mxu0 %v868
        %1112 = vmatpush1.bf16.msra.mxu0 %v867
        %1113 = vmatprep.subr.bf16.mxu0 %v872
        %1114 = vmatpush1.bf16.msra.mxu0 %v871
        %1115 = vmatprep.subr.bf16.mxu0 %v876
        %1116 = vmatpush1.bf16.msra.mxu0 %v875
        %1117 = vmatprep.subr.bf16.mxu0 %v880
        %1118 = vmatpush1.bf16.msra.mxu0 %v879
        %1119 = vmatprep.subr.bf16.mxu0 %v884
        %1120 = vmatpush1.bf16.msra.mxu0 %v883
        %1121 = vmatprep.subr.bf16.mxu0 %v888
        %1122 = vmatpush1.bf16.msra.mxu0 %v887
        %1123 = vmatprep.subr.bf16.mxu0 %v892
        %1124 = vmatpush1.bf16.msra.mxu0 %v891
        %1125 = vmatprep.subr.bf16.mxu0 %v896
        %1126 = vmatpush1.bf16.msra.mxu0 %v895
        %1127 = vmatprep.subr.bf16.mxu0 %v900
        %1128 = vmatpush1.bf16.msra.mxu0 %v899
        %1129 = vmatprep.subr.bf16.mxu0 %v904
        %1130 = vmatpush1.bf16.msra.mxu0 %v903
        %1131 = vmatprep.subr.bf16.mxu0 %v908
        %1132 = vmatpush1.bf16.msra.mxu0 %v907
        %1133 = vmatprep.mubr.bf16.mxu0 %v394
        %1134 = vmatmul.mubr.bf16.gmra.mrb[0].mxu0 %v393
        %v1135 = vpop.f32.mrb[0].mxu0
        %v1136 = vadd.f32 %v1095, %v1135
        %v1137 = vpop.f32.mrb[0].mxu0
        %v1138 = vadd.f32 %v1097, %v1137
        %v1139 = vpop.f32.mrb[0].mxu0
        %v1140 = vpop.f32.mrb[0].mxu0
        %1141 = vdwg.mxu0
        %1142 = vmatprep.subr.bf16.mxu0 %v786
        %1143 = vmatpush1.bf16.msra.mxu0 %v785
        %1144 = vmatprep.subr.bf16.mxu0 %v790
        %1145 = vmatpush1.bf16.msra.mxu0 %v789
        %1146 = vmatprep.subr.bf16.mxu0 %v794
        %1147 = vmatpush1.bf16.msra.mxu0 %v793
        %1148 = vmatprep.subr.bf16.mxu0 %v798
        %1149 = vmatpush1.bf16.msra.mxu0 %v797
        %1150 = vmatprep.subr.bf16.mxu0 %v802
        %1151 = vmatpush1.bf16.msra.mxu0 %v801
        %1152 = vmatprep.subr.bf16.mxu0 %v806
        %1153 = vmatpush1.bf16.msra.mxu0 %v805
        %1154 = vmatprep.subr.bf16.mxu0 %v810
        %1155 = vmatpush1.bf16.msra.mxu0 %v809
        %1156 = vmatprep.subr.bf16.mxu0 %v814
        %1157 = vmatpush1.bf16.msra.mxu0 %v813
        %1158 = vmatprep.subr.bf16.mxu0 %v818
        %1159 = vmatpush1.bf16.msra.mxu0 %v817
        %1160 = vmatprep.subr.bf16.mxu0 %v822
        %1161 = vmatpush1.bf16.msra.mxu0 %v821
        %1162 = vmatprep.subr.bf16.mxu0 %v826
        %1163 = vmatpush1.bf16.msra.mxu0 %v825
        %1164 = vmatprep.subr.bf16.mxu0 %v830
        %1165 = vmatpush1.bf16.msra.mxu0 %v829
        %1166 = vmatprep.subr.bf16.mxu0 %v834
        %1167 = vmatpush1.bf16.msra.mxu0 %v833
        %1168 = vmatprep.subr.bf16.mxu0 %v838
        %1169 = vmatpush1.bf16.msra.mxu0 %v837
        %1170 = vmatprep.subr.bf16.mxu0 %v842
        %1171 = vmatpush1.bf16.msra.mxu0 %v841
        %1172 = vmatprep.subr.bf16.mxu0 %v846
        %1173 = vmatpush1.bf16.msra.mxu0 %v845
        %1174 = vmatprep.mubr.bf16.mxu0 %v392
        %1175 = vmatmul.mubr.bf16.gmra.mrb[0].mxu0 %v385
        %v1176 = vpop.f32.mrb[0].mxu0
        %v1177 = vadd.f32 %v1051, %v1176
        %v1178 = vpop.f32.mrb[0].mxu0
        %v1179 = vadd.f32 %v1055, %v1178
        %v1180 = vpop.f32.mrb[0].mxu0
        %v1181 = vpop.f32.mrb[0].mxu0
        %1182 = vdwg.mxu0
        %1183 = vmatprep.subr.bf16.mxu0 %v850
        %1184 = vmatpush1.bf16.msra.mxu0 %v849
        %1185 = vmatprep.subr.bf16.mxu0 %v854
        %1186 = vmatpush1.bf16.msra.mxu0 %v853
        %1187 = vmatprep.subr.bf16.mxu0 %v858
        %1188 = vmatpush1.bf16.msra.mxu0 %v857
        %1189 = vmatprep.subr.bf16.mxu0 %v862
        %1190 = vmatpush1.bf16.msra.mxu0 %v861
        %1191 = vmatprep.subr.bf16.mxu0 %v866
        %1192 = vmatpush1.bf16.msra.mxu0 %v865
        %1193 = vmatprep.subr.bf16.mxu0 %v870
        %1194 = vmatpush1.bf16.msra.mxu0 %v869
        %1195 = vmatprep.subr.bf16.mxu0 %v874
        %1196 = vmatpush1.bf16.msra.mxu0 %v873
        %1197 = vmatprep.subr.bf16.mxu0 %v878
        %1198 = vmatpush1.bf16.msra.mxu0 %v877
        %1199 = vmatprep.subr.bf16.mxu0 %v882
        %1200 = vmatpush1.bf16.msra.mxu0 %v881
        %1201 = vmatprep.subr.bf16.mxu0 %v886
        %1202 = vmatpush1.bf16.msra.mxu0 %v885
        %1203 = vmatprep.subr.bf16.mxu0 %v890
        %1204 = vmatpush1.bf16.msra.mxu0 %v889
        %1205 = vmatprep.subr.bf16.mxu0 %v894
        %1206 = vmatpush1.bf16.msra.mxu0 %v893
        %1207 = vmatprep.subr.bf16.mxu0 %v898
        %1208 = vmatpush1.bf16.msra.mxu0 %v897
        %1209 = vmatprep.subr.bf16.mxu0 %v902
        %1210 = vmatpush1.bf16.msra.mxu0 %v901
        %1211 = vmatprep.subr.bf16.mxu0 %v906
        %1212 = vmatpush1.bf16.msra.mxu0 %v905
        %1213 = vmatprep.subr.bf16.mxu0 %v910
        %1214 = vmatpush1.bf16.msra.mxu0 %v909
        %1215 = vmatprep.mubr.bf16.mxu0 %v394
        %1216 = vmatmul.mubr.bf16.gmra.mrb[0].mxu0 %v393
        %v1217 = vpop.f32.mrb[0].mxu0
        %v1218 = vadd.f32 %v1177, %v1217
        %v1219 = vpop.f32.mrb[0].mxu0
        %v1220 = vadd.f32 %v1179, %v1219
        %v1221 = vpop.f32.mrb[0].mxu0
        %v1222 = vpop.f32.mrb[0].mxu0
        %1223 = vdwg.mxu0
        %v1224 = vpack.c.bf16 %v1136, %v1136
        %v1225 = vpack.c.bf16 %v1138, %v1138
        %v1226 = vpack.c.bf16 %v1218, %v1218
        %v1227 = vpack.c.bf16 %v1220, %v1220
        %v1232 = vcombine.low %v1224, %v1225
        %v1233 = vcombine.low %v1226, %v1227
        %v1235 = vunpack.c.l.s4 1966171168
        %v1236 = vunpack.c.0.s8 %v1235
        %v1237 = vlaneseq
        %v1238 = vshrl.u32 %v1237, 7
        %v1239 = vsub.s32 %v1236, %v1238
        %v1240 = vrot.slane %v1232, %v1239
        %v1242 = vunpack.c.l.s4 1966171168
        %v1243 = vunpack.c.0.s8 %v1242
        %v1244 = vlaneseq
        %v1245 = vshrl.u32 %v1244, 7
        %v1246 = vsub.s32 %v1243, %v1245
        %v1247 = vrot.slane %v1233, %v1246
        %v1248 = vcombine.low %v1240, %v1247
        %v1250 = vunpack.c.l.s4 1966171168
        %v1251 = vunpack.c.0.s8 %v1250
        %v1252 = vlaneseq
        %v1253 = vshrl.u32 %v1252, 7
        %v1254 = vsub.s32 %v1251, %v1253
        %v1255 = vrot.slane %v1248, %v1254
        %vm1257 = vcmask 1040384
        %vm1258 = vsmask.f32 256
        %vm1259 = vmand %vm1257, %vm1258
        %vm1260 = vcmask 1041409
        %vm1261 = vsmask.f32 1280
        %vm1262 = vmand %vm1260, %vm1261
        %vm1263 = vmor %vm1262, %vm1259
        %vm1264 = vcmask 1042434
        %vm1265 = vsmask.f32 2304
        %vm1266 = vmand %vm1264, %vm1265
        %vm1267 = vmor %vm1266, %vm1263
        %vm1268 = vcmask 1043459
        %vm1269 = vsmask.f32 3328
        %vm1270 = vmand %vm1268, %vm1269
        %vm1271 = vmor %vm1270, %vm1267
        %v1272 = vld [vmem:[%s236] sm:$0xf]
        %v1273 = vsel %vm1271, %v1255, %v1272
        %1274 = vst [vmem:[%s236] sm:$0xf] %v1273
        %s1275 = sand.u32 %s102, 1
        %s1276 = scalar_lea.sflag [#allocation4], %s1275
        %s1277 = sand.u32 %s102, 1
        %s1278 = smul.addr %s1277, 4
        %s1279 = scalar_lea.vmem [#allocation8], %s1278
        // Predicated region
        $region45: #{tpu_custom_call.1} parent=31 // pred_check
          %p1280 = pneg %p112
        $region46: #{tpu_custom_call.1} parent=31 // pred_check_branch
          %1282 = sbr.rel (%p1280) target = $region48
        $region47: #{tpu_custom_call.1} parent=31 // pred_region
          %s1283 = smul.u32 4, %s21
          %s1285 = ssub.s32 64, 64
          %1286 = vsyncadd %s1276, %s1285
          %s1287 = smul.addr %s1283, 16
          %s1288 = scalar_lea.hbm %s3, %s1287
          %s1290 = sshll.u32 %s1279, 4
          %s1291 = int_to_ptr.vmem [resolvable:$true] %s1290
          %1293 = dma.vmem_to_hbm [thread:$0]  %s1291, 64, %s1288, %s1276
        $region48: #{tpu_custom_call.1} parent=31 // pred_fallthru
          _
      $region32: #{tpu_custom_call.1} parent=5 // pred_fallthru
        _
      %p1294 = scmp.le.s32.totalorder 2, %s16
      // Predicated region
      $region49: #{tpu_custom_call.1} parent=5 // pred_check
        %p1295 = pneg %p1294
      $region50: #{tpu_custom_call.1} parent=5 // pred_check_branch
        %1297 = sbr.rel (%p1295) target = $region52
      $region51: #{tpu_custom_call.1} parent=5 // pred_region
        %s1298 = ssub.s32 %s16, 2
        // Predicated region
        $region53: #{tpu_custom_call.1} parent=51 // pred_check
          %p1299 = pneg %p118
        $region54: #{tpu_custom_call.1} parent=51 // pred_check_branch
          %1301 = sbr.rel (%p1299) target = $region56
        $region55: #{tpu_custom_call.1} parent=51 // pred_region
          %s1302 = sand.u32 %s103, 1
          %s1303 = scalar_lea.sflag [#allocation4], %s1302
          %s1304 = sand.u32 %s103, 1
          %s1305 = smul.addr %s1304, 4
          %s1306 = scalar_lea.vmem [#allocation8], %s1305
          %1307 = dma.done %s1303, 64
        $region56: #{tpu_custom_call.1} parent=51 // pred_fallthru
          _
      $region52: #{tpu_custom_call.1} parent=5 // pred_fallthru
        _
    $region6: #{tpu_custom_call.1} parent=1 // loop_footer
      %s20 = sadd.s32 1, %s16
    $region7: #{tpu_custom_call.1} parent=1 // loop_footer_branch
      %15 = sbr.rel target = $region3
    $region8: #{tpu_custom_call.1} parent=1 // loop_exit
      _
    %1308 = vsyncpa [#allocation3], 1
    %s1309 = scalar_lea.sflag [#allocation3], 1
    %1310 = vsyncpa %s1309, 1
    %1311 = vsyncpa [#allocation6], 1
    %s1312 = scalar_lea.sflag [#allocation6], 1
    %1313 = vsyncpa %s1312, 1
    %1314 = vsyncpa [#allocation4], 1
    %s1315 = scalar_lea.sflag [#allocation4], 1
    %1316 = vsyncpa %s1315, 1

</llo_original>
